<compile_context>
chip_gen: v7x
topology: tpu7x:2x2x1
jax: 0.10.0
libtpu: 0.0.40
codegen_flags: <defaults>
</compile_context>

<pallas_src>
import math

import jax
import jax.numpy as jnp
from jax.experimental import pallas as pl
from jax.experimental.pallas import tpu as pltpu


def _round_up(x, m):
    return ((x + m - 1) // m) * m


def critic_kernel(x_ref, w1_ref, b1_ref, w2_ref, b2_ref, w3_ref, b3_ref, q_ref):
    """One batch tile of the 3-layer MLP, computed with batch on the lane axis.

    x_ref : (in_dim, tb)   input tile (bf16 or f32)
    w1_ref: (256, in_dim)  layer1.weight (resident)
    b1_ref: (256, 1)
    w2_ref: (128, 256)     layer2.weight (resident)
    b2_ref: (128, 1)
    w3_ref: (128, 1)       output.weight^T (resident, f32)
    b3_ref: (1, 1)
    q_ref : (1, tb)        lane-dense output tile (f32)
    """
    # Layer 1: (256, in_dim) @ (in_dim, tb) -> (256, tb), f32 accumulation.
    h1 = jnp.dot(w1_ref[...], x_ref[...], preferred_element_type=jnp.float32)
    h1 = jnp.maximum(h1 + b1_ref[...], 0.0)          # f32 bias + ReLU (VPU)

    # Layer 2: (128, 256) @ (256, tb) -> (128, tb), f32 accumulation.
    h2 = jnp.dot(w2_ref[...], h1.astype(w2_ref.dtype),
                 preferred_element_type=jnp.float32)
    h2 = jnp.maximum(h2 + b2_ref[...], 0.0)

    # Layer 3 (out_features == 1): VPU multiply + sublane reduce.  The result
    # is already lane-dense (1, tb) -- no MXU weight-push for a degenerate
    # matmul and no relayout/transpose before the store.
    q = jnp.sum(h2 * w3_ref[...], axis=0, keepdims=True) + b3_ref[...]
    q_ref[...] = q.astype(q_ref.dtype)


def critic_forward(s, a, params, *, block_batch=None, use_bf16_matmul=True):
    """s: (B, state_dim) f32, a: (B, action_dim) f32 -> q: (B, 1) f32.

    use_bf16_matmul=True (default) casts x / W1 / W2 to bf16 for full-rate MXU
    on all generations; accumulation, biases, ReLU and the output layer stay
    f32 (results differ from the f32 path at ~1e-3 relative level).
    """
    w1, b1, w2, b2, w3, b3 = params
    batch, state_dim = s.shape
    action_dim = a.shape[1]
    in_dim = state_dim + action_dim
    assert w1.shape[1] == in_dim, (w1.shape, in_dim)

    mm_dtype = jnp.bfloat16 if use_bf16_matmul else jnp.float32
    w1_mm = w1.astype(mm_dtype)
    w2_mm = w2.astype(mm_dtype)

    # ---- batch tile selection (batch lives on the lane axis) --------------
    if block_batch is None:
        if batch <= 256:
            tb = _round_up(batch, 8)                       # one full-extent tile
        else:
            # >= 2 tiles (so both v7x TensorCores get work); <= 2048 rows/tile
            # (~3-4 MiB of per-tile activations, fits every generation's VMEM).
            tb = min(2048, _round_up(-(-batch // 2), 128))
    else:
        if block_batch >= batch:
            tb = _round_up(batch, 8)
        else:
            tb = _round_up(block_batch, 128)               # lane-aligned tiles
    padded_b = _round_up(batch, tb)

    # Single fused XLA op: concat + (optional) bf16 cast + pad + transpose.
    x = jnp.concatenate([s, a], axis=1).astype(mm_dtype)
    if padded_b != batch:
        x = jnp.pad(x, ((0, padded_b - batch), (0, 0)))
    x_t = x.T                                              # (in_dim, padded_b)

    grid = (padded_b // tb,)

    def resident(arr):
        # Same block index every step -> stays VMEM-resident (no re-DMA).
        # TODO(synk): pipeline_mode=pl.Buffered(1) would drop each resident
        # weight's (tiny) second buffer; left at default for portability.
        return pl.BlockSpec(arr.shape, lambda i: (0, 0))

    q_slab = pl.pallas_call(
        critic_kernel,
        out_shape=jax.ShapeDtypeStruct((1, padded_b), jnp.float32),
        grid=grid,
        in_specs=[
            pl.BlockSpec((in_dim, tb), lambda i: (0, i)),  # x_T batch tile
            resident(w1_mm), resident(b1),
            resident(w2_mm), resident(b2),
            resident(w3), resident(b3),
        ],
        out_specs=pl.BlockSpec((1, tb), lambda i: (0, i)), # lane-dense q slab
        compiler_params=pltpu.CompilerParams(
            # Independent batch tiles; on v7x this axis is shared by the two
            # TensorCores (switch to pltpu.CORE_PARALLEL there if desired).
            dimension_semantics=(pltpu.PARALLEL,),
        ),
    )(x_t, w1_mm, b1, w2_mm, b2, w3, b3)

    return q_slab[0, :batch].reshape(batch, 1)


def init_critic_params(key, state_dim, action_dim, init_w=0.003):
    """Mirrors PyTorch nn.Linear defaults + uniform(-init_w, init_w) output init.

    Weights are stored in PyTorch's (out_features, in_features) layout, which
    is exactly the layout the transposed-orientation kernel consumes; the
    output weight is stored as a (128, 1) column, biases as columns.
    """
    hid1, hid2 = 256, 128
    in_dim = state_dim + action_dim
    k1, k2, k3, k4, k5, k6 = jax.random.split(key, 6)

    bound1 = 1.0 / math.sqrt(in_dim)
    w1 = jax.random.uniform(k1, (hid1, in_dim), jnp.float32, -bound1, bound1)
    b1 = jax.random.uniform(k2, (hid1, 1), jnp.float32, -bound1, bound1)

    bound2 = 1.0 / math.sqrt(hid1)
    w2 = jax.random.uniform(k3, (hid2, hid1), jnp.float32, -bound2, bound2)
    b2 = jax.random.uniform(k4, (hid2, 1), jnp.float32, -bound2, bound2)

    w3 = jax.random.uniform(k5, (hid2, 1), jnp.float32, -init_w, init_w)
    b3 = jax.random.uniform(k6, (1, 1), jnp.float32, -init_w, init_w)
    return (w1, b1, w2, b2, w3, b3)


def critic_reference(s, a, params):
    """Plain-JAX reference matching the PyTorch module."""
    w1, b1, w2, b2, w3, b3 = params
    x = jnp.concatenate([s, a], axis=1)
    h1 = jax.nn.relu(x @ w1.T + b1[:, 0])
    h2 = jax.nn.relu(h1 @ w2.T + b2[:, 0])
    return h2 @ w3 + b3[0]


if __name__ == "__main__":
    state_dim, action_dim = 16, 4

    key = jax.random.PRNGKey(0)
    kp, ks, ka, ks2, ka2 = jax.random.split(key, 5)
    params = init_critic_params(kp, state_dim, action_dim)

    # Small batch, exact f32 path (single lane-dense tile).
    batch = 8
    s = jax.random.normal(ks, (batch, state_dim), jnp.float32)
    a = jax.random.normal(ka, (batch, action_dim), jnp.float32)
    q = jax.block_until_ready(critic_forward(s, a, params, use_bf16_matmul=False))
    q_ref = critic_reference(s, a, params)
    assert q.shape == (batch, 1), q.shape
    assert jnp.allclose(q, q_ref, atol=5e-5, rtol=1e-4), (q, q_ref)

    # Non-multiple batch with explicit tile: multi-step parallel grid, batch
    # padding, lane-dense multi-tile output.  Still exact f32.
    batch2 = 300
    s2 = jax.random.normal(ks2, (batch2, state_dim), jnp.float32)
    a2 = jax.random.normal(ka2, (batch2, action_dim), jnp.float32)
    q2 = jax.block_until_ready(
        critic_forward(s2, a2, params, block_batch=128, use_bf16_matmul=False))
    q2_ref = critic_reference(s2, a2, params)
    assert q2.shape == (batch2, 1), q2.shape
    assert jnp.allclose(q2, q2_ref, atol=5e-5, rtol=1e-4), (q2, q2_ref)

    # Default fast path (bf16 MXU inputs, f32 accumulation): looser tolerance.
    q_bf16 = jax.block_until_ready(critic_forward(s2, a2, params, block_batch=128))
    assert q_bf16.shape == (batch2, 1), q_bf16.shape
    assert jnp.allclose(q_bf16, q2_ref, atol=1e-2, rtol=5e-2), (q_bf16, q2_ref)

    print("KERNEL_OK")
</pallas_src>

<mosaic_0001>
module attributes {stable_mosaic.version = 11 : i64} {
  func.func @critic_kernel(%arg0: i32, %arg1: memref<20x8xf32, #tpu.memory_space<vmem>>, %arg2: memref<256x20xf32, #tpu.memory_space<vmem>>, %arg3: memref<256x1xf32, #tpu.memory_space<vmem>>, %arg4: memref<128x256xf32, #tpu.memory_space<vmem>>, %arg5: memref<128x1xf32, #tpu.memory_space<vmem>>, %arg6: memref<128x1xf32, #tpu.memory_space<vmem>>, %arg7: memref<1x1xf32, #tpu.memory_space<vmem>>, %arg8: memref<1x8xf32, #tpu.memory_space<vmem>>) attributes {dimension_semantics = [#tpu.dimension_semantics<parallel>], iteration_bounds = array<i64: 1>, scalar_prefetch = 0 : i64, scratch_operands = 0 : i64, tpu.core_type = #tpu.core_type<tc>, window_params = [{transform_indices = @transform_0, window_bounds = array<i64: 20, 8>}, {pipeline_mode = #tpu.pipeline_mode<synchronous>, transform_indices = @transform_1, window_bounds = array<i64: 256, 20>}, {pipeline_mode = #tpu.pipeline_mode<synchronous>, transform_indices = @transform_2, window_bounds = array<i64: 256, 1>}, {pipeline_mode = #tpu.pipeline_mode<synchronous>, transform_indices = @transform_3, window_bounds = array<i64: 128, 256>}, {pipeline_mode = #tpu.pipeline_mode<synchronous>, transform_indices = @transform_4, window_bounds = array<i64: 128, 1>}, {pipeline_mode = #tpu.pipeline_mode<synchronous>, transform_indices = @transform_5, window_bounds = array<i64: 128, 1>}, {pipeline_mode = #tpu.pipeline_mode<synchronous>, transform_indices = @transform_6, window_bounds = array<i64: 1, 1>}, {transform_indices = @transform_7, window_bounds = array<i64: 1, 8>}]} {
    %c0 = arith.constant 0 : index
    %c0_0 = arith.constant 0 : index
    %0 = vector.load %arg2[%c0, %c0_0] : memref<256x20xf32, #tpu.memory_space<vmem>>, vector<256x20xf32>
    %c0_1 = arith.constant 0 : index
    %c0_2 = arith.constant 0 : index
    %1 = vector.load %arg1[%c0_1, %c0_2] : memref<20x8xf32, #tpu.memory_space<vmem>>, vector<20x8xf32>
    %cst = arith.constant dense<0.000000e+00> : vector<256x8xf32>
    %2 = tpu.matmul %0, %1, %cst {dimension_numbers = #tpu.dot_dimension_numbers<[1], [0], [0], [1], [0, 0, 1, 1], [], []>} : vector<256x20xf32>, vector<20x8xf32>, vector<256x8xf32> -> vector<256x8xf32>
    %c0_3 = arith.constant 0 : index
    %c0_4 = arith.constant 0 : index
    %3 = vector.load %arg3[%c0_3, %c0_4] : memref<256x1xf32, #tpu.memory_space<vmem>>, vector<256x1xf32>
    %4 = vector.broadcast %3 : vector<256x1xf32> to vector<256x8xf32>
    %5 = arith.addf %2, %4 : vector<256x8xf32>
    %cst_5 = arith.constant 0.000000e+00 : f32
    %6 = vector.broadcast %cst_5 : f32 to vector<256x8xf32>
    %7 = arith.maximumf %5, %6 : vector<256x8xf32>
    %c0_6 = arith.constant 0 : index
    %c0_7 = arith.constant 0 : index
    %8 = vector.load %arg4[%c0_6, %c0_7] : memref<128x256xf32, #tpu.memory_space<vmem>>, vector<128x256xf32>
    %cst_8 = arith.constant dense<0.000000e+00> : vector<128x8xf32>
    %9 = tpu.matmul %8, %7, %cst_8 {dimension_numbers = #tpu.dot_dimension_numbers<[1], [0], [0], [1], [0, 0, 1, 1], [], []>} : vector<128x256xf32>, vector<256x8xf32>, vector<128x8xf32> -> vector<128x8xf32>
    %c0_9 = arith.constant 0 : index
    %c0_10 = arith.constant 0 : index
    %10 = vector.load %arg5[%c0_9, %c0_10] : memref<128x1xf32, #tpu.memory_space<vmem>>, vector<128x1xf32>
    %11 = vector.broadcast %10 : vector<128x1xf32> to vector<128x8xf32>
    %12 = arith.addf %9, %11 : vector<128x8xf32>
    %cst_11 = arith.constant 0.000000e+00 : f32
    %13 = vector.broadcast %cst_11 : f32 to vector<128x8xf32>
    %14 = arith.maximumf %12, %13 : vector<128x8xf32>
    %c0_12 = arith.constant 0 : index
    %c0_13 = arith.constant 0 : index
    %15 = vector.load %arg6[%c0_12, %c0_13] : memref<128x1xf32, #tpu.memory_space<vmem>>, vector<128x1xf32>
    %16 = vector.broadcast %15 : vector<128x1xf32> to vector<128x8xf32>
    %17 = arith.mulf %14, %16 : vector<128x8xf32>
    %cst_14 = arith.constant dense<0.000000e+00> : vector<8xf32>
    %18 = vector.multi_reduction <add>, %17, %cst_14 [0] : vector<128x8xf32> to vector<8xf32>
    %19 = vector.shape_cast %18 : vector<8xf32> to vector<1x8xf32>
    %c0_15 = arith.constant 0 : index
    %c0_16 = arith.constant 0 : index
    %20 = vector.load %arg7[%c0_15, %c0_16] : memref<1x1xf32, #tpu.memory_space<vmem>>, vector<1x1xf32>
    %21 = vector.broadcast %20 : vector<1x1xf32> to vector<1x8xf32>
    %22 = arith.addf %19, %21 : vector<1x8xf32>
    %c0_17 = arith.constant 0 : index
    %c0_18 = arith.constant 0 : index
    %23 = vector.load %arg8[%c0_17, %c0_18] : memref<1x8xf32, #tpu.memory_space<vmem>>, vector<1x8xf32>
    tpu.vector_store %arg8[%c0_17, %c0_18], %22 {strides = array<i32>} : memref<1x8xf32, #tpu.memory_space<vmem>>, vector<1x8xf32>,
    return
  }
  func.func @transform_0(%arg0: i32) -> (i32, i32) {
    %c0_i32 = arith.constant 0 : i32
    %c0_i32_0 = arith.constant 0 : i32
    return %c0_i32, %arg0 : i32, i32
  }
  func.func @transform_1(%arg0: i32) -> (i32, i32) {
    %c0_i32 = arith.constant 0 : i32
    %c0_i32_0 = arith.constant 0 : i32
    %c0_i32_1 = arith.constant 0 : i32
    return %c0_i32, %c0_i32_0 : i32, i32
  }
  func.func @transform_2(%arg0: i32) -> (i32, i32) {
    %c0_i32 = arith.constant 0 : i32
    %c0_i32_0 = arith.constant 0 : i32
    %c0_i32_1 = arith.constant 0 : i32
    return %c0_i32, %c0_i32_0 : i32, i32
  }
  func.func @transform_3(%arg0: i32) -> (i32, i32) {
    %c0_i32 = arith.constant 0 : i32
    %c0_i32_0 = arith.constant 0 : i32
    %c0_i32_1 = arith.constant 0 : i32
    return %c0_i32, %c0_i32_0 : i32, i32
  }
  func.func @transform_4(%arg0: i32) -> (i32, i32) {
    %c0_i32 = arith.constant 0 : i32
    %c0_i32_0 = arith.constant 0 : i32
    %c0_i32_1 = arith.constant 0 : i32
    return %c0_i32, %c0_i32_0 : i32, i32
  }
  func.func @transform_5(%arg0: i32) -> (i32, i32) {
    %c0_i32 = arith.constant 0 : i32
    %c0_i32_0 = arith.constant 0 : i32
    %c0_i32_1 = arith.constant 0 : i32
    return %c0_i32, %c0_i32_0 : i32, i32
  }
  func.func @transform_6(%arg0: i32) -> (i32, i32) {
    %c0_i32 = arith.constant 0 : i32
    %c0_i32_0 = arith.constant 0 : i32
    %c0_i32_1 = arith.constant 0 : i32
    return %c0_i32, %c0_i32_0 : i32, i32
  }
  func.func @transform_7(%arg0: i32) -> (i32, i32) {
    %c0_i32 = arith.constant 0 : i32
    %c0_i32_0 = arith.constant 0 : i32
    return %c0_i32, %arg0 : i32, i32
  }
}

</mosaic_0001>

<llo_original>
// kernel: tpu_custom_call.1
$region0: #{tpu_custom_call.1}
  #allocation0 [shape = 'u32[]', space=smem, size = 0x4, offset = 0x4, fixed_abs, tag = 'smem constant byte address 0x4 - core index']
  #allocation1 [shape = 'u32[144,128]{1,0:T(1,128)}', space=vmem, size = 0x12000, scoped, tag = 'internal scratch']
  #allocation2 [shape = 'f32[1,1]{1,0:T(1,128)S(1)}', space=vmem, size = 0x200, scoped, tag = 'scoped memory for tpu_custom_call.1']
  %s0 = inlined_call_operand.vmem [shape: f32[20,8], index: 0, kind: input, shape index: {}]
  %s1 = inlined_call_operand.vmem [shape: f32[256,20], index: 1, kind: input, shape index: {}]
  %s2 = inlined_call_operand.vmem [shape: f32[256,1], index: 2, kind: input, shape index: {}]
  %s3 = inlined_call_operand.vmem [shape: f32[128,256], index: 3, kind: input, shape index: {}]
  %s4 = inlined_call_operand.vmem [shape: f32[128,1], index: 4, kind: input, shape index: {}]
  %s5 = inlined_call_operand.vmem [shape: f32[128,1], index: 5, kind: input, shape index: {}]
  %s6 = inlined_call_operand.<no memory space> [shape: f32[1,1], index: 6, kind: input, shape index: {}]
  %s7 = inlined_call_operand.hbm [shape: f32[1,8], index: 7, kind: output, shape index: {}]
  %s8 = sld [smem:[#allocation0]]
  $region38: #{tpu_custom_call.1} parent=0
    _
  %s10 = ssub.s32 1, %s8
  %s11 = scalar_select 0, %s10, %s8
  %v12 = vstv %s6
  %13 = vst [vmem:[#allocation2] sm:$0x1] %v12
  $region1: #{tpu_custom_call.1} parent=0
    #allocation3 [shape = 'u8[512]{0}', space=vmem, size = 0x400, scoped, tag = 'output window, operand 0, single buffered']
    #allocation4 [shape = 's32[1]{0}', space=sflag, size = 0x4, scoped, tag = 'scoped memory for tpu_custom_call.1']
    %14 = vsyncpa [#allocation4], 0
    // Predicated region
    $region2: #{tpu_custom_call.1} parent=1 // pred_check
      _
    $region3: #{tpu_custom_call.1} parent=1 // pred_check_branch
      %16 = sbr.rel (0) target = $region5
    $region4: #{tpu_custom_call.1} parent=1 // pred_region
      _
    $region5: #{tpu_custom_call.1} parent=1 // pred_fallthru
      _
    // Predicated region
    $region6: #{tpu_custom_call.1} parent=1 // pred_check
      _
    $region7: #{tpu_custom_call.1} parent=1 // pred_check_branch
      %18 = sbr.rel (0) target = $region9
    $region8: #{tpu_custom_call.1} parent=1 // pred_region
      _
    $region9: #{tpu_custom_call.1} parent=1 // pred_fallthru
      _
    // Predicated region
    $region10: #{tpu_custom_call.1} parent=1 // pred_check
      _
    $region11: #{tpu_custom_call.1} parent=1 // pred_check_branch
      %20 = sbr.rel (0) target = $region13
    $region12: #{tpu_custom_call.1} parent=1 // pred_region
      _
    $region13: #{tpu_custom_call.1} parent=1 // pred_fallthru
      _
    // Predicated region
    $region14: #{tpu_custom_call.1} parent=1 // pred_check
      _
    $region15: #{tpu_custom_call.1} parent=1 // pred_check_branch
      %22 = sbr.rel (0) target = $region17
    $region16: #{tpu_custom_call.1} parent=1 // pred_region
      _
    $region17: #{tpu_custom_call.1} parent=1 // pred_fallthru
      _
    // Predicated region
    $region18: #{tpu_custom_call.1} parent=1 // pred_check
      _
    $region19: #{tpu_custom_call.1} parent=1 // pred_check_branch
      %24 = sbr.rel (0) target = $region21
    $region20: #{tpu_custom_call.1} parent=1 // pred_region
      _
    $region21: #{tpu_custom_call.1} parent=1 // pred_fallthru
      _
    // Predicated region
    $region22: #{tpu_custom_call.1} parent=1 // pred_check
      _
    $region23: #{tpu_custom_call.1} parent=1 // pred_check_branch
      %26 = sbr.rel (0) target = $region25
    $region24: #{tpu_custom_call.1} parent=1 // pred_region
      _
    $region25: #{tpu_custom_call.1} parent=1 // pred_fallthru
      _
    // Predicated region
    $region26: #{tpu_custom_call.1} parent=1 // pred_check
      _
    $region27: #{tpu_custom_call.1} parent=1 // pred_check_branch
      %28 = sbr.rel (0) target = $region29
    $region28: #{tpu_custom_call.1} parent=1 // pred_region
      _
    $region29: #{tpu_custom_call.1} parent=1 // pred_fallthru
      _
    %v29 = vld [vmem:[%s1] sm:$0xff]
    %v30 = vld [vmem:[%s1 + $0x8] sm:$0xff]
    %v31 = vld [vmem:[%s1 + $0x10] sm:$0xff]
    %v32 = vld [vmem:[%s1 + $0x18] sm:$0xff]
    %v33 = vld [vmem:[%s1 + $0x20] sm:$0xff]
    %v34 = vld [vmem:[%s1 + $0x28] sm:$0xff]
    %v35 = vld [vmem:[%s1 + $0x30] sm:$0xff]
    %v36 = vld [vmem:[%s1 + $0x38] sm:$0xff]
    %v37 = vld [vmem:[%s1 + $0x40] sm:$0xff]
    %v38 = vld [vmem:[%s1 + $0x48] sm:$0xff]
    %v39 = vld [vmem:[%s1 + $0x50] sm:$0xff]
    %v40 = vld [vmem:[%s1 + $0x58] sm:$0xff]
    %v41 = vld [vmem:[%s1 + $0x60] sm:$0xff]
    %v42 = vld [vmem:[%s1 + $0x68] sm:$0xff]
    %v43 = vld [vmem:[%s1 + $0x70] sm:$0xff]
    %v44 = vld [vmem:[%s1 + $0x78] sm:$0xff]
    %v45 = vld [vmem:[%s1 + $0x80] sm:$0xff]
    %v46 = vld [vmem:[%s1 + $0x88] sm:$0xff]
    %v47 = vld [vmem:[%s1 + $0x90] sm:$0xff]
    %v48 = vld [vmem:[%s1 + $0x98] sm:$0xff]
    %v49 = vld [vmem:[%s1 + $0xa0] sm:$0xff]
    %v50 = vld [vmem:[%s1 + $0xa8] sm:$0xff]
    %v51 = vld [vmem:[%s1 + $0xb0] sm:$0xff]
    %v52 = vld [vmem:[%s1 + $0xb8] sm:$0xff]
    %v53 = vld [vmem:[%s1 + $0xc0] sm:$0xff]
    %v54 = vld [vmem:[%s1 + $0xc8] sm:$0xff]
    %v55 = vld [vmem:[%s1 + $0xd0] sm:$0xff]
    %v56 = vld [vmem:[%s1 + $0xd8] sm:$0xff]
    %v57 = vld [vmem:[%s1 + $0xe0] sm:$0xff]
    %v58 = vld [vmem:[%s1 + $0xe8] sm:$0xff]
    %v59 = vld [vmem:[%s1 + $0xf0] sm:$0xff]
    %v60 = vld [vmem:[%s1 + $0xf8] sm:$0xff]
    %v61 = vld [vmem:[%s0] sm:$0xff]
    %v62 = vld [vmem:[%s0 + $0x8] sm:$0xff]
    %v63 = vld [vmem:[%s0 + $0x10] sm:$0xf]
    %v64 = vld [vmem:[%s2] sm:$0xff]
    %v65 = vld [vmem:[%s2 + $0x8] sm:$0xff]
    %v66 = vld [vmem:[%s2 + $0x10] sm:$0xff]
    %v67 = vld [vmem:[%s2 + $0x18] sm:$0xff]
    %v68 = vld [vmem:[%s2 + $0x20] sm:$0xff]
    %v69 = vld [vmem:[%s2 + $0x28] sm:$0xff]
    %v70 = vld [vmem:[%s2 + $0x30] sm:$0xff]
    %v71 = vld [vmem:[%s2 + $0x38] sm:$0xff]
    %v72 = vld [vmem:[%s2 + $0x40] sm:$0xff]
    %v73 = vld [vmem:[%s2 + $0x48] sm:$0xff]
    %v74 = vld [vmem:[%s2 + $0x50] sm:$0xff]
    %v75 = vld [vmem:[%s2 + $0x58] sm:$0xff]
    %v76 = vld [vmem:[%s2 + $0x60] sm:$0xff]
    %v77 = vld [vmem:[%s2 + $0x68] sm:$0xff]
    %v78 = vld [vmem:[%s2 + $0x70] sm:$0xff]
    %v79 = vld [vmem:[%s2 + $0x78] sm:$0xff]
    %v80 = vld [vmem:[%s2 + $0x80] sm:$0xff]
    %v81 = vld [vmem:[%s2 + $0x88] sm:$0xff]
    %v82 = vld [vmem:[%s2 + $0x90] sm:$0xff]
    %v83 = vld [vmem:[%s2 + $0x98] sm:$0xff]
    %v84 = vld [vmem:[%s2 + $0xa0] sm:$0xff]
    %v85 = vld [vmem:[%s2 + $0xa8] sm:$0xff]
    %v86 = vld [vmem:[%s2 + $0xb0] sm:$0xff]
    %v87 = vld [vmem:[%s2 + $0xb8] sm:$0xff]
    %v88 = vld [vmem:[%s2 + $0xc0] sm:$0xff]
    %v89 = vld [vmem:[%s2 + $0xc8] sm:$0xff]
    %v90 = vld [vmem:[%s2 + $0xd0] sm:$0xff]
    %v91 = vld [vmem:[%s2 + $0xd8] sm:$0xff]
    %v92 = vld [vmem:[%s2 + $0xe0] sm:$0xff]
    %v93 = vld [vmem:[%s2 + $0xe8] sm:$0xff]
    %v94 = vld [vmem:[%s2 + $0xf0] sm:$0xff]
    %v95 = vld [vmem:[%s2 + $0xf8] sm:$0xff]
    %97 = vset.pattern.permute.xlu0 0
    %98 = vperm.xlu0 %97, %v64
    %v99 = vpop.permute.xlu0 %98
    %102 = vset.pattern.permute.xlu0 0
    %103 = vperm.xlu0 %102, %v65
    %v104 = vpop.permute.xlu0 %103
    %107 = vset.pattern.permute.xlu0 0
    %108 = vperm.xlu0 %107, %v66
    %v109 = vpop.permute.xlu0 %108
    %112 = vset.pattern.permute.xlu0 0
    %113 = vperm.xlu0 %112, %v67
    %v114 = vpop.permute.xlu0 %113
    %117 = vset.pattern.permute.xlu0 0
    %118 = vperm.xlu0 %117, %v68
    %v119 = vpop.permute.xlu0 %118
    %122 = vset.pattern.permute.xlu0 0
    %123 = vperm.xlu0 %122, %v69
    %v124 = vpop.permute.xlu0 %123
    %127 = vset.pattern.permute.xlu0 0
    %128 = vperm.xlu0 %127, %v70
    %v129 = vpop.permute.xlu0 %128
    %132 = vset.pattern.permute.xlu0 0
    %133 = vperm.xlu0 %132, %v71
    %v134 = vpop.permute.xlu0 %133
    %137 = vset.pattern.permute.xlu0 0
    %138 = vperm.xlu0 %137, %v72
    %v139 = vpop.permute.xlu0 %138
    %142 = vset.pattern.permute.xlu0 0
    %143 = vperm.xlu0 %142, %v73
    %v144 = vpop.permute.xlu0 %143
    %147 = vset.pattern.permute.xlu0 0
    %148 = vperm.xlu0 %147, %v74
    %v149 = vpop.permute.xlu0 %148
    %152 = vset.pattern.permute.xlu0 0
    %153 = vperm.xlu0 %152, %v75
    %v154 = vpop.permute.xlu0 %153
    %157 = vset.pattern.permute.xlu0 0
    %158 = vperm.xlu0 %157, %v76
    %v159 = vpop.permute.xlu0 %158
    %162 = vset.pattern.permute.xlu0 0
    %163 = vperm.xlu0 %162, %v77
    %v164 = vpop.permute.xlu0 %163
    %167 = vset.pattern.permute.xlu0 0
    %168 = vperm.xlu0 %167, %v78
    %v169 = vpop.permute.xlu0 %168
    %172 = vset.pattern.permute.xlu0 0
    %173 = vperm.xlu0 %172, %v79
    %v174 = vpop.permute.xlu0 %173
    %177 = vset.pattern.permute.xlu0 0
    %178 = vperm.xlu0 %177, %v80
    %v179 = vpop.permute.xlu0 %178
    %182 = vset.pattern.permute.xlu0 0
    %183 = vperm.xlu0 %182, %v81
    %v184 = vpop.permute.xlu0 %183
    %187 = vset.pattern.permute.xlu0 0
    %188 = vperm.xlu0 %187, %v82
    %v189 = vpop.permute.xlu0 %188
    %192 = vset.pattern.permute.xlu0 0
    %193 = vperm.xlu0 %192, %v83
    %v194 = vpop.permute.xlu0 %193
    %197 = vset.pattern.permute.xlu0 0
    %198 = vperm.xlu0 %197, %v84
    %v199 = vpop.permute.xlu0 %198
    %202 = vset.pattern.permute.xlu0 0
    %203 = vperm.xlu0 %202, %v85
    %v204 = vpop.permute.xlu0 %203
    %207 = vset.pattern.permute.xlu0 0
    %208 = vperm.xlu0 %207, %v86
    %v209 = vpop.permute.xlu0 %208
    %212 = vset.pattern.permute.xlu0 0
    %213 = vperm.xlu0 %212, %v87
    %v214 = vpop.permute.xlu0 %213
    %217 = vset.pattern.permute.xlu0 0
    %218 = vperm.xlu0 %217, %v88
    %v219 = vpop.permute.xlu0 %218
    %222 = vset.pattern.permute.xlu0 0
    %223 = vperm.xlu0 %222, %v89
    %v224 = vpop.permute.xlu0 %223
    %227 = vset.pattern.permute.xlu0 0
    %228 = vperm.xlu0 %227, %v90
    %v229 = vpop.permute.xlu0 %228
    %232 = vset.pattern.permute.xlu0 0
    %233 = vperm.xlu0 %232, %v91
    %v234 = vpop.permute.xlu0 %233
    %237 = vset.pattern.permute.xlu0 0
    %238 = vperm.xlu0 %237, %v92
    %v239 = vpop.permute.xlu0 %238
    %242 = vset.pattern.permute.xlu0 0
    %243 = vperm.xlu0 %242, %v93
    %v244 = vpop.permute.xlu0 %243
    %247 = vset.pattern.permute.xlu0 0
    %248 = vperm.xlu0 %247, %v94
    %v249 = vpop.permute.xlu0 %248
    %252 = vset.pattern.permute.xlu0 0
    %253 = vperm.xlu0 %252, %v95
    %v254 = vpop.permute.xlu0 %253
    %vm256 = vcmask 162816
    %v258 = vsel %vm256, %v29, 0
    %v261 = vsel %vm256, %v30, 0
    %v264 = vsel %vm256, %v31, 0
    %v267 = vsel %vm256, %v32, 0
    %v270 = vsel %vm256, %v33, 0
    %v273 = vsel %vm256, %v34, 0
    %v276 = vsel %vm256, %v35, 0
    %v279 = vsel %vm256, %v36, 0
    %v282 = vsel %vm256, %v37, 0
    %v285 = vsel %vm256, %v38, 0
    %v288 = vsel %vm256, %v39, 0
    %v291 = vsel %vm256, %v40, 0
    %v294 = vsel %vm256, %v41, 0
    %v297 = vsel %vm256, %v42, 0
    %v300 = vsel %vm256, %v43, 0
    %v303 = vsel %vm256, %v44, 0
    %v306 = vsel %vm256, %v45, 0
    %v309 = vsel %vm256, %v46, 0
    %v312 = vsel %vm256, %v47, 0
    %v315 = vsel %vm256, %v48, 0
    %v318 = vsel %vm256, %v49, 0
    %v321 = vsel %vm256, %v50, 0
    %v324 = vsel %vm256, %v51, 0
    %v327 = vsel %vm256, %v52, 0
    %v330 = vsel %vm256, %v53, 0
    %v333 = vsel %vm256, %v54, 0
    %v336 = vsel %vm256, %v55, 0
    %v339 = vsel %vm256, %v56, 0
    %v342 = vsel %vm256, %v57, 0
    %v345 = vsel %vm256, %v58, 0
    %v348 = vsel %vm256, %v59, 0
    %v351 = vsel %vm256, %v60, 0
    %vm353 = vcmask 1043456
    %v355 = vsel %vm353, %v63, 0
    %357 = vmatprep.subr.mxu0 0.0
    %358 = vmatpush1.msra.mxu0 %v61
    %359 = vmatprep.subr.mxu0 0.0
    %360 = vmatpush1.msra.mxu0 %v62
    %361 = vmatprep.subr.mxu0 0.0
    %362 = vmatpush1.msra.mxu0 %v355
    %363 = vmatprep.subr.mxu0 0.0
    %364 = vmatpush1.msra.mxu0 0.0
    %365 = vmatprep.subr.mxu0 0.0
    %366 = vmatpush1.msra.mxu0 0.0
    %367 = vmatprep.subr.mxu0 0.0
    %368 = vmatpush1.msra.mxu0 0.0
    %369 = vmatprep.subr.mxu0 0.0
    %370 = vmatpush1.msra.mxu0 0.0
    %371 = vmatprep.subr.mxu0 0.0
    %372 = vmatpush1.msra.mxu0 0.0
    %373 = vmatprep.subr.mxu0 0.0
    %374 = vmatpush1.msra.mxu0 0.0
    %375 = vmatprep.subr.mxu0 0.0
    %376 = vmatpush1.msra.mxu0 0.0
    %377 = vmatprep.subr.mxu0 0.0
    %378 = vmatpush1.msra.mxu0 0.0
    %379 = vmatprep.subr.mxu0 0.0
    %380 = vmatpush1.msra.mxu0 0.0
    %381 = vmatprep.subr.mxu0 0.0
    %382 = vmatpush1.msra.mxu0 0.0
    %383 = vmatprep.subr.mxu0 0.0
    %384 = vmatpush1.msra.mxu0 0.0
    %385 = vmatprep.subr.mxu0 0.0
    %386 = vmatpush1.msra.mxu0 0.0
    %387 = vmatprep.subr.mxu0 0.0
    %388 = vmatpush1.msra.mxu0 0.0
    %389 = vmatprep.subr.mxu0 0.0
    %390 = vmatpush1.msra.mxu0 0.0
    %391 = vmatprep.subr.mxu0 0.0
    %392 = vmatpush1.msra.mxu0 0.0
    %393 = vmatprep.subr.mxu0 0.0
    %394 = vmatpush1.msra.mxu0 0.0
    %395 = vmatprep.subr.mxu0 0.0
    %396 = vmatpush1.msra.mxu0 0.0
    %397 = vmatprep.subr.mxu0 0.0
    %398 = vmatpush1.msra.mxu0 0.0
    %399 = vmatprep.subr.mxu0 0.0
    %400 = vmatpush1.msra.mxu0 0.0
    %401 = vmatprep.subr.mxu0 0.0
    %402 = vmatpush1.msra.mxu0 0.0
    %403 = vmatprep.subr.mxu0 0.0
    %404 = vmatpush1.msra.mxu0 0.0
    %405 = vmatprep.subr.mxu0 0.0
    %406 = vmatpush1.msra.mxu0 0.0
    %407 = vmatprep.subr.mxu0 0.0
    %408 = vmatpush1.msra.mxu0 0.0
    %409 = vmatprep.subr.mxu0 0.0
    %410 = vmatpush1.msra.mxu0 0.0
    %411 = vmatprep.subr.mxu0 0.0
    %412 = vmatpush1.msra.mxu0 0.0
    %413 = vmatprep.subr.mxu0 0.0
    %414 = vmatpush1.msra.mxu0 0.0
    %415 = vmatprep.subr.mxu0 0.0
    %416 = vmatpush1.msra.mxu0 0.0
    %417 = vmatprep.subr.mxu0 0.0
    %418 = vmatpush1.msra.mxu0 0.0
    %419 = vmatprep.subr.mxu0 0.0
    %420 = vmatpush1.msra.mxu0 0.0
    %421 = vmatprep.mubr.f32.mxu0 0.0
    %422 = vmatmul.mubr.f32.gmra.mrb[0].mxu0 %v258
    %v423 = vpop.f32.mrb[0].mxu0
    %v424 = vadd.f32 %v99, %v423
    %v425 = vpop.f32.mrb[0].mxu0
    %426 = vmatprep.mubr.f32.mxu0 0.0
    %427 = vmatmul.mubr.f32.gmra.mrb[0].mxu0 %v261
    %v428 = vpop.f32.mrb[0].mxu0
    %v429 = vadd.f32 %v104, %v428
    %v430 = vpop.f32.mrb[0].mxu0
    %431 = vmatprep.mubr.f32.mxu0 0.0
    %432 = vmatmul.mubr.f32.gmra.mrb[0].mxu0 %v264
    %v433 = vpop.f32.mrb[0].mxu0
    %v434 = vadd.f32 %v109, %v433
    %v435 = vpop.f32.mrb[0].mxu0
    %436 = vmatprep.mubr.f32.mxu0 0.0
    %437 = vmatmul.mubr.f32.gmra.mrb[0].mxu0 %v267
    %v438 = vpop.f32.mrb[0].mxu0
    %v439 = vadd.f32 %v114, %v438
    %v440 = vpop.f32.mrb[0].mxu0
    %441 = vmatprep.mubr.f32.mxu0 0.0
    %442 = vmatmul.mubr.f32.gmra.mrb[0].mxu0 %v270
    %v443 = vpop.f32.mrb[0].mxu0
    %v444 = vadd.f32 %v119, %v443
    %v445 = vpop.f32.mrb[0].mxu0
    %446 = vmatprep.mubr.f32.mxu0 0.0
    %447 = vmatmul.mubr.f32.gmra.mrb[0].mxu0 %v273
    %v448 = vpop.f32.mrb[0].mxu0
    %v449 = vadd.f32 %v124, %v448
    %v450 = vpop.f32.mrb[0].mxu0
    %451 = vmatprep.mubr.f32.mxu0 0.0
    %452 = vmatmul.mubr.f32.gmra.mrb[0].mxu0 %v276
    %v453 = vpop.f32.mrb[0].mxu0
    %v454 = vadd.f32 %v129, %v453
    %v455 = vpop.f32.mrb[0].mxu0
    %456 = vmatprep.mubr.f32.mxu0 0.0
    %457 = vmatmul.mubr.f32.gmra.mrb[0].mxu0 %v279
    %v458 = vpop.f32.mrb[0].mxu0
    %v459 = vadd.f32 %v134, %v458
    %v460 = vpop.f32.mrb[0].mxu0
    %461 = vmatprep.mubr.f32.mxu0 0.0
    %462 = vmatmul.mubr.f32.gmra.mrb[0].mxu0 %v282
    %v463 = vpop.f32.mrb[0].mxu0
    %v464 = vadd.f32 %v139, %v463
    %v465 = vpop.f32.mrb[0].mxu0
    %466 = vmatprep.mubr.f32.mxu0 0.0
    %467 = vmatmul.mubr.f32.gmra.mrb[0].mxu0 %v285
    %v468 = vpop.f32.mrb[0].mxu0
    %v469 = vadd.f32 %v144, %v468
    %v470 = vpop.f32.mrb[0].mxu0
    %471 = vmatprep.mubr.f32.mxu0 0.0
    %472 = vmatmul.mubr.f32.gmra.mrb[0].mxu0 %v288
    %v473 = vpop.f32.mrb[0].mxu0
    %v474 = vadd.f32 %v149, %v473
    %v475 = vpop.f32.mrb[0].mxu0
    %476 = vmatprep.mubr.f32.mxu0 0.0
    %477 = vmatmul.mubr.f32.gmra.mrb[0].mxu0 %v291
    %v478 = vpop.f32.mrb[0].mxu0
    %v479 = vadd.f32 %v154, %v478
    %v480 = vpop.f32.mrb[0].mxu0
    %481 = vmatprep.mubr.f32.mxu0 0.0
    %482 = vmatmul.mubr.f32.gmra.mrb[0].mxu0 %v294
    %v483 = vpop.f32.mrb[0].mxu0
    %v484 = vadd.f32 %v159, %v483
    %v485 = vpop.f32.mrb[0].mxu0
    %486 = vmatprep.mubr.f32.mxu0 0.0
    %487 = vmatmul.mubr.f32.gmra.mrb[0].mxu0 %v297
    %v488 = vpop.f32.mrb[0].mxu0
    %v489 = vadd.f32 %v164, %v488
    %v490 = vpop.f32.mrb[0].mxu0
    %491 = vmatprep.mubr.f32.mxu0 0.0
    %492 = vmatmul.mubr.f32.gmra.mrb[0].mxu0 %v300
    %v493 = vpop.f32.mrb[0].mxu0
    %v494 = vadd.f32 %v169, %v493
    %v495 = vpop.f32.mrb[0].mxu0
    %496 = vmatprep.mubr.f32.mxu0 0.0
    %497 = vmatmul.mubr.f32.gmra.mrb[0].mxu0 %v303
    %v498 = vpop.f32.mrb[0].mxu0
    %v499 = vadd.f32 %v174, %v498
    %v500 = vpop.f32.mrb[0].mxu0
    %501 = vmatprep.mubr.f32.mxu0 0.0
    %502 = vmatmul.mubr.f32.gmra.mrb[0].mxu0 %v306
    %v503 = vpop.f32.mrb[0].mxu0
    %v504 = vadd.f32 %v179, %v503
    %v505 = vpop.f32.mrb[0].mxu0
    %506 = vmatprep.mubr.f32.mxu0 0.0
    %507 = vmatmul.mubr.f32.gmra.mrb[0].mxu0 %v309
    %v508 = vpop.f32.mrb[0].mxu0
    %v509 = vadd.f32 %v184, %v508
    %v510 = vpop.f32.mrb[0].mxu0
    %511 = vmatprep.mubr.f32.mxu0 0.0
    %512 = vmatmul.mubr.f32.gmra.mrb[0].mxu0 %v312
    %v513 = vpop.f32.mrb[0].mxu0
    %v514 = vadd.f32 %v189, %v513
    %v515 = vpop.f32.mrb[0].mxu0
    %516 = vmatprep.mubr.f32.mxu0 0.0
    %517 = vmatmul.mubr.f32.gmra.mrb[0].mxu0 %v315
    %v518 = vpop.f32.mrb[0].mxu0
    %v519 = vadd.f32 %v194, %v518
    %v520 = vpop.f32.mrb[0].mxu0
    %521 = vmatprep.mubr.f32.mxu0 0.0
    %522 = vmatmul.mubr.f32.gmra.mrb[0].mxu0 %v318
    %v523 = vpop.f32.mrb[0].mxu0
    %v524 = vadd.f32 %v199, %v523
    %v525 = vpop.f32.mrb[0].mxu0
    %526 = vmatprep.mubr.f32.mxu0 0.0
    %527 = vmatmul.mubr.f32.gmra.mrb[0].mxu0 %v321
    %v528 = vpop.f32.mrb[0].mxu0
    %v529 = vadd.f32 %v204, %v528
    %v530 = vpop.f32.mrb[0].mxu0
    %531 = vmatprep.mubr.f32.mxu0 0.0
    %532 = vmatmul.mubr.f32.gmra.mrb[0].mxu0 %v324
    %v533 = vpop.f32.mrb[0].mxu0
    %v534 = vadd.f32 %v209, %v533
    %v535 = vpop.f32.mrb[0].mxu0
    %536 = vmatprep.mubr.f32.mxu0 0.0
    %537 = vmatmul.mubr.f32.gmra.mrb[0].mxu0 %v327
    %v538 = vpop.f32.mrb[0].mxu0
    %v539 = vadd.f32 %v214, %v538
    %v540 = vpop.f32.mrb[0].mxu0
    %541 = vmatprep.mubr.f32.mxu0 0.0
    %542 = vmatmul.mubr.f32.gmra.mrb[0].mxu0 %v330
    %v543 = vpop.f32.mrb[0].mxu0
    %v544 = vadd.f32 %v219, %v543
    %v545 = vpop.f32.mrb[0].mxu0
    %546 = vmatprep.mubr.f32.mxu0 0.0
    %547 = vmatmul.mubr.f32.gmra.mrb[0].mxu0 %v333
    %v548 = vpop.f32.mrb[0].mxu0
    %v549 = vadd.f32 %v224, %v548
    %v550 = vpop.f32.mrb[0].mxu0
    %551 = vmatprep.mubr.f32.mxu0 0.0
    %552 = vmatmul.mubr.f32.gmra.mrb[0].mxu0 %v336
    %v553 = vpop.f32.mrb[0].mxu0
    %v554 = vadd.f32 %v229, %v553
    %v555 = vpop.f32.mrb[0].mxu0
    %556 = vmatprep.mubr.f32.mxu0 0.0
    %557 = vmatmul.mubr.f32.gmra.mrb[0].mxu0 %v339
    %v558 = vpop.f32.mrb[0].mxu0
    %v559 = vadd.f32 %v234, %v558
    %v560 = vpop.f32.mrb[0].mxu0
    %561 = vmatprep.mubr.f32.mxu0 0.0
    %562 = vmatmul.mubr.f32.gmra.mrb[0].mxu0 %v342
    %v563 = vpop.f32.mrb[0].mxu0
    %v564 = vadd.f32 %v239, %v563
    %v565 = vpop.f32.mrb[0].mxu0
    %566 = vmatprep.mubr.f32.mxu0 0.0
    %567 = vmatmul.mubr.f32.gmra.mrb[0].mxu0 %v345
    %v568 = vpop.f32.mrb[0].mxu0
    %v569 = vadd.f32 %v244, %v568
    %v570 = vpop.f32.mrb[0].mxu0
    %571 = vmatprep.mubr.f32.mxu0 0.0
    %572 = vmatmul.mubr.f32.gmra.mrb[0].mxu0 %v348
    %v573 = vpop.f32.mrb[0].mxu0
    %v574 = vadd.f32 %v249, %v573
    %v575 = vpop.f32.mrb[0].mxu0
    %576 = vmatprep.mubr.f32.mxu0 0.0
    %577 = vmatmul.mubr.f32.gmra.mrb[0].mxu0 %v351
    %v578 = vpop.f32.mrb[0].mxu0
    %v579 = vadd.f32 %v254, %v578
    %v580 = vpop.f32.mrb[0].mxu0
    %581 = vdwg.mxu0
    %v582 = vmax.f32 %v424, 0.0
    %v583 = vmax.f32 %v429, 0.0
    %v584 = vmax.f32 %v434, 0.0
    %v585 = vmax.f32 %v439, 0.0
    %v586 = vmax.f32 %v444, 0.0
    %v587 = vmax.f32 %v449, 0.0
    %v588 = vmax.f32 %v454, 0.0
    %v589 = vmax.f32 %v459, 0.0
    %v590 = vmax.f32 %v464, 0.0
    %v591 = vmax.f32 %v469, 0.0
    %v592 = vmax.f32 %v474, 0.0
    %v593 = vmax.f32 %v479, 0.0
    %v594 = vmax.f32 %v484, 0.0
    %v595 = vmax.f32 %v489, 0.0
    %v596 = vmax.f32 %v494, 0.0
    %v597 = vmax.f32 %v499, 0.0
    %v598 = vmax.f32 %v504, 0.0
    %v599 = vmax.f32 %v509, 0.0
    %v600 = vmax.f32 %v514, 0.0
    %v601 = vmax.f32 %v519, 0.0
    %v602 = vmax.f32 %v524, 0.0
    %v603 = vmax.f32 %v529, 0.0
    %v604 = vmax.f32 %v534, 0.0
    %v605 = vmax.f32 %v539, 0.0
    %v606 = vmax.f32 %v544, 0.0
    %v607 = vmax.f32 %v549, 0.0
    %v608 = vmax.f32 %v554, 0.0
    %v609 = vmax.f32 %v559, 0.0
    %v610 = vmax.f32 %v564, 0.0
    %v611 = vmax.f32 %v569, 0.0
    %v612 = vmax.f32 %v574, 0.0
    %v613 = vmax.f32 %v579, 0.0
    %v614 = vld [vmem:[%s3] sm:$0xff]
    %v615 = vld [vmem:[%s3 + $0x8] sm:$0xff]
    %v616 = vld [vmem:[%s3 + $0x10] sm:$0xff]
    %v617 = vld [vmem:[%s3 + $0x18] sm:$0xff]
    %v618 = vld [vmem:[%s3 + $0x20] sm:$0xff]
    %v619 = vld [vmem:[%s3 + $0x28] sm:$0xff]
    %v620 = vld [vmem:[%s3 + $0x30] sm:$0xff]
    %v621 = vld [vmem:[%s3 + $0x38] sm:$0xff]
    %v622 = vld [vmem:[%s3 + $0x40] sm:$0xff]
    %v623 = vld [vmem:[%s3 + $0x48] sm:$0xff]
    %v624 = vld [vmem:[%s3 + $0x50] sm:$0xff]
    %v625 = vld [vmem:[%s3 + $0x58] sm:$0xff]
    %v626 = vld [vmem:[%s3 + $0x60] sm:$0xff]
    %v627 = vld [vmem:[%s3 + $0x68] sm:$0xff]
    %v628 = vld [vmem:[%s3 + $0x70] sm:$0xff]
    %v629 = vld [vmem:[%s3 + $0x78] sm:$0xff]
    %v630 = vld [vmem:[%s3 + $0x80] sm:$0xff]
    %v631 = vld [vmem:[%s3 + $0x88] sm:$0xff]
    %v632 = vld [vmem:[%s3 + $0x90] sm:$0xff]
    %v633 = vld [vmem:[%s3 + $0x98] sm:$0xff]
    %v634 = vld [vmem:[%s3 + $0xa0] sm:$0xff]
    %v635 = vld [vmem:[%s3 + $0xa8] sm:$0xff]
    %v636 = vld [vmem:[%s3 + $0xb0] sm:$0xff]
    %v637 = vld [vmem:[%s3 + $0xb8] sm:$0xff]
    %v638 = vld [vmem:[%s3 + $0xc0] sm:$0xff]
    %v639 = vld [vmem:[%s3 + $0xc8] sm:$0xff]
    %v640 = vld [vmem:[%s3 + $0xd0] sm:$0xff]
    %v641 = vld [vmem:[%s3 + $0xd8] sm:$0xff]
    %v642 = vld [vmem:[%s3 + $0xe0] sm:$0xff]
    %v643 = vld [vmem:[%s3 + $0xe8] sm:$0xff]
    %v644 = vld [vmem:[%s3 + $0xf0] sm:$0xff]
    %v645 = vld [vmem:[%s3 + $0xf8] sm:$0xff]
    %v646 = vld [vmem:[%s4] sm:$0xff]
    %v647 = vld [vmem:[%s4 + $0x8] sm:$0xff]
    %v648 = vld [vmem:[%s4 + $0x10] sm:$0xff]
    %v649 = vld [vmem:[%s4 + $0x18] sm:$0xff]
    %v650 = vld [vmem:[%s4 + $0x20] sm:$0xff]
    %v651 = vld [vmem:[%s4 + $0x28] sm:$0xff]
    %v652 = vld [vmem:[%s4 + $0x30] sm:$0xff]
    %v653 = vld [vmem:[%s4 + $0x38] sm:$0xff]
    %v654 = vld [vmem:[%s4 + $0x40] sm:$0xff]
    %v655 = vld [vmem:[%s4 + $0x48] sm:$0xff]
    %v656 = vld [vmem:[%s4 + $0x50] sm:$0xff]
    %v657 = vld [vmem:[%s4 + $0x58] sm:$0xff]
    %v658 = vld [vmem:[%s4 + $0x60] sm:$0xff]
    %v659 = vld [vmem:[%s4 + $0x68] sm:$0xff]
    %v660 = vld [vmem:[%s4 + $0x70] sm:$0xff]
    %v661 = vld [vmem:[%s4 + $0x78] sm:$0xff]
    %663 = vset.pattern.permute.xlu0 0
    %664 = vperm.xlu0 %663, %v646
    %v665 = vpop.permute.xlu0 %664
    %668 = vset.pattern.permute.xlu0 0
    %669 = vperm.xlu0 %668, %v647
    %v670 = vpop.permute.xlu0 %669
    %673 = vset.pattern.permute.xlu0 0
    %674 = vperm.xlu0 %673, %v648
    %v675 = vpop.permute.xlu0 %674
    %678 = vset.pattern.permute.xlu0 0
    %679 = vperm.xlu0 %678, %v649
    %v680 = vpop.permute.xlu0 %679
    %683 = vset.pattern.permute.xlu0 0
    %684 = vperm.xlu0 %683, %v650
    %v685 = vpop.permute.xlu0 %684
    %688 = vset.pattern.permute.xlu0 0
    %689 = vperm.xlu0 %688, %v651
    %v690 = vpop.permute.xlu0 %689
    %693 = vset.pattern.permute.xlu0 0
    %694 = vperm.xlu0 %693, %v652
    %v695 = vpop.permute.xlu0 %694
    %698 = vset.pattern.permute.xlu0 0
    %699 = vperm.xlu0 %698, %v653
    %v700 = vpop.permute.xlu0 %699
    %703 = vset.pattern.permute.xlu0 0
    %704 = vperm.xlu0 %703, %v654
    %v705 = vpop.permute.xlu0 %704
    %708 = vset.pattern.permute.xlu0 0
    %709 = vperm.xlu0 %708, %v655
    %v710 = vpop.permute.xlu0 %709
    %713 = vset.pattern.permute.xlu0 0
    %714 = vperm.xlu0 %713, %v656
    %v715 = vpop.permute.xlu0 %714
    %718 = vset.pattern.permute.xlu0 0
    %719 = vperm.xlu0 %718, %v657
    %v720 = vpop.permute.xlu0 %719
    %723 = vset.pattern.permute.xlu0 0
    %724 = vperm.xlu0 %723, %v658
    %v725 = vpop.permute.xlu0 %724
    %728 = vset.pattern.permute.xlu0 0
    %729 = vperm.xlu0 %728, %v659
    %v730 = vpop.permute.xlu0 %729
    %733 = vset.pattern.permute.xlu0 0
    %734 = vperm.xlu0 %733, %v660
    %v735 = vpop.permute.xlu0 %734
    %738 = vset.pattern.permute.xlu0 0
    %739 = vperm.xlu0 %738, %v661
    %v740 = vpop.permute.xlu0 %739
    %742 = vmatprep.subr.mxu0 0.0
    %743 = vmatpush1.msra.mxu0 %v582
    %744 = vmatprep.subr.mxu0 0.0
    %745 = vmatpush1.msra.mxu0 %v583
    %746 = vmatprep.subr.mxu0 0.0
    %747 = vmatpush1.msra.mxu0 %v584
    %748 = vmatprep.subr.mxu0 0.0
    %749 = vmatpush1.msra.mxu0 %v585
    %750 = vmatprep.subr.mxu0 0.0
    %751 = vmatpush1.msra.mxu0 %v586
    %752 = vmatprep.subr.mxu0 0.0
    %753 = vmatpush1.msra.mxu0 %v587
    %754 = vmatprep.subr.mxu0 0.0
    %755 = vmatpush1.msra.mxu0 %v588
    %756 = vmatprep.subr.mxu0 0.0
    %757 = vmatpush1.msra.mxu0 %v589
    %758 = vmatprep.subr.mxu0 0.0
    %759 = vmatpush1.msra.mxu0 %v590
    %760 = vmatprep.subr.mxu0 0.0
    %761 = vmatpush1.msra.mxu0 %v591
    %762 = vmatprep.subr.mxu0 0.0
    %763 = vmatpush1.msra.mxu0 %v592
    %764 = vmatprep.subr.mxu0 0.0
    %765 = vmatpush1.msra.mxu0 %v593
    %766 = vmatprep.subr.mxu0 0.0
    %767 = vmatpush1.msra.mxu0 %v594
    %768 = vmatprep.subr.mxu0 0.0
    %769 = vmatpush1.msra.mxu0 %v595
    %770 = vmatprep.subr.mxu0 0.0
    %771 = vmatpush1.msra.mxu0 %v596
    %772 = vmatprep.subr.mxu0 0.0
    %773 = vmatpush1.msra.mxu0 %v597
    %774 = vmatprep.subr.mxu0 0.0
    %775 = vmatpush1.msra.mxu0 %v598
    %776 = vmatprep.subr.mxu0 0.0
    %777 = vmatpush1.msra.mxu0 %v599
    %778 = vmatprep.subr.mxu0 0.0
    %779 = vmatpush1.msra.mxu0 %v600
    %780 = vmatprep.subr.mxu0 0.0
    %781 = vmatpush1.msra.mxu0 %v601
    %782 = vmatprep.subr.mxu0 0.0
    %783 = vmatpush1.msra.mxu0 %v602
    %784 = vmatprep.subr.mxu0 0.0
    %785 = vmatpush1.msra.mxu0 %v603
    %786 = vmatprep.subr.mxu0 0.0
    %787 = vmatpush1.msra.mxu0 %v604
    %788 = vmatprep.subr.mxu0 0.0
    %789 = vmatpush1.msra.mxu0 %v605
    %790 = vmatprep.subr.mxu0 0.0
    %791 = vmatpush1.msra.mxu0 %v606
    %792 = vmatprep.subr.mxu0 0.0
    %793 = vmatpush1.msra.mxu0 %v607
    %794 = vmatprep.subr.mxu0 0.0
    %795 = vmatpush1.msra.mxu0 %v608
    %796 = vmatprep.subr.mxu0 0.0
    %797 = vmatpush1.msra.mxu0 %v609
    %798 = vmatprep.subr.mxu0 0.0
    %799 = vmatpush1.msra.mxu0 %v610
    %800 = vmatprep.subr.mxu0 0.0
    %801 = vmatpush1.msra.mxu0 %v611
    %802 = vmatprep.subr.mxu0 0.0
    %803 = vmatpush1.msra.mxu0 %v612
    %804 = vmatprep.subr.mxu0 0.0
    %805 = vmatpush1.msra.mxu0 %v613
    %806 = vmatprep.mubr.f32.mxu0 %v615
    %807 = vmatmul.mubr.f32.gmra.mrb[0].mxu0 %v614
    %v808 = vpop.f32.mrb[0].mxu0
    %v809 = vadd.f32 %v665, %v808
    %v810 = vpop.f32.mrb[0].mxu0
    %811 = vmatprep.mubr.f32.mxu0 %v617
    %812 = vmatmul.mubr.f32.gmra.mrb[0].mxu0 %v616
    %v813 = vpop.f32.mrb[0].mxu0
    %v814 = vadd.f32 %v670, %v813
    %v815 = vpop.f32.mrb[0].mxu0
    %816 = vmatprep.mubr.f32.mxu0 %v619
    %817 = vmatmul.mubr.f32.gmra.mrb[0].mxu0 %v618
    %v818 = vpop.f32.mrb[0].mxu0
    %v819 = vadd.f32 %v675, %v818
    %v820 = vpop.f32.mrb[0].mxu0
    %821 = vmatprep.mubr.f32.mxu0 %v621
    %822 = vmatmul.mubr.f32.gmra.mrb[0].mxu0 %v620
    %v823 = vpop.f32.mrb[0].mxu0
    %v824 = vadd.f32 %v680, %v823
    %v825 = vpop.f32.mrb[0].mxu0
    %826 = vmatprep.mubr.f32.mxu0 %v623
    %827 = vmatmul.mubr.f32.gmra.mrb[0].mxu0 %v622
    %v828 = vpop.f32.mrb[0].mxu0
    %v829 = vadd.f32 %v685, %v828
    %v830 = vpop.f32.mrb[0].mxu0
    %831 = vmatprep.mubr.f32.mxu0 %v625
    %832 = vmatmul.mubr.f32.gmra.mrb[0].mxu0 %v624
    %v833 = vpop.f32.mrb[0].mxu0
    %v834 = vadd.f32 %v690, %v833
    %v835 = vpop.f32.mrb[0].mxu0
    %836 = vmatprep.mubr.f32.mxu0 %v627
    %837 = vmatmul.mubr.f32.gmra.mrb[0].mxu0 %v626
    %v838 = vpop.f32.mrb[0].mxu0
    %v839 = vadd.f32 %v695, %v838
    %v840 = vpop.f32.mrb[0].mxu0
    %841 = vmatprep.mubr.f32.mxu0 %v629
    %842 = vmatmul.mubr.f32.gmra.mrb[0].mxu0 %v628
    %v843 = vpop.f32.mrb[0].mxu0
    %v844 = vadd.f32 %v700, %v843
    %v845 = vpop.f32.mrb[0].mxu0
    %846 = vmatprep.mubr.f32.mxu0 %v631
    %847 = vmatmul.mubr.f32.gmra.mrb[0].mxu0 %v630
    %v848 = vpop.f32.mrb[0].mxu0
    %v849 = vadd.f32 %v705, %v848
    %v850 = vpop.f32.mrb[0].mxu0
    %851 = vmatprep.mubr.f32.mxu0 %v633
    %852 = vmatmul.mubr.f32.gmra.mrb[0].mxu0 %v632
    %v853 = vpop.f32.mrb[0].mxu0
    %v854 = vadd.f32 %v710, %v853
    %v855 = vpop.f32.mrb[0].mxu0
    %856 = vmatprep.mubr.f32.mxu0 %v635
    %857 = vmatmul.mubr.f32.gmra.mrb[0].mxu0 %v634
    %v858 = vpop.f32.mrb[0].mxu0
    %v859 = vadd.f32 %v715, %v858
    %v860 = vpop.f32.mrb[0].mxu0
    %861 = vmatprep.mubr.f32.mxu0 %v637
    %862 = vmatmul.mubr.f32.gmra.mrb[0].mxu0 %v636
    %v863 = vpop.f32.mrb[0].mxu0
    %v864 = vadd.f32 %v720, %v863
    %v865 = vpop.f32.mrb[0].mxu0
    %866 = vmatprep.mubr.f32.mxu0 %v639
    %867 = vmatmul.mubr.f32.gmra.mrb[0].mxu0 %v638
    %v868 = vpop.f32.mrb[0].mxu0
    %v869 = vadd.f32 %v725, %v868
    %v870 = vpop.f32.mrb[0].mxu0
    %871 = vmatprep.mubr.f32.mxu0 %v641
    %872 = vmatmul.mubr.f32.gmra.mrb[0].mxu0 %v640
    %v873 = vpop.f32.mrb[0].mxu0
    %v874 = vadd.f32 %v730, %v873
    %v875 = vpop.f32.mrb[0].mxu0
    %876 = vmatprep.mubr.f32.mxu0 %v643
    %877 = vmatmul.mubr.f32.gmra.mrb[0].mxu0 %v642
    %v878 = vpop.f32.mrb[0].mxu0
    %v879 = vadd.f32 %v735, %v878
    %v880 = vpop.f32.mrb[0].mxu0
    %881 = vmatprep.mubr.f32.mxu0 %v645
    %882 = vmatmul.mubr.f32.gmra.mrb[0].mxu0 %v644
    %v883 = vpop.f32.mrb[0].mxu0
    %v884 = vadd.f32 %v740, %v883
    %v885 = vpop.f32.mrb[0].mxu0
    %886 = vdwg.mxu0
    %v887 = vmax.f32 %v809, 0.0
    %v888 = vmax.f32 %v814, 0.0
    %v889 = vmax.f32 %v819, 0.0
    %v890 = vmax.f32 %v824, 0.0
    %v891 = vmax.f32 %v829, 0.0
    %v892 = vmax.f32 %v834, 0.0
    %v893 = vmax.f32 %v839, 0.0
    %v894 = vmax.f32 %v844, 0.0
    %v895 = vmax.f32 %v849, 0.0
    %v896 = vmax.f32 %v854, 0.0
    %v897 = vmax.f32 %v859, 0.0
    %v898 = vmax.f32 %v864, 0.0
    %v899 = vmax.f32 %v869, 0.0
    %v900 = vmax.f32 %v874, 0.0
    %v901 = vmax.f32 %v879, 0.0
    %v902 = vmax.f32 %v884, 0.0
    %v903 = vld [vmem:[%s5] sm:$0xff]
    %v904 = vld [vmem:[%s5 + $0x8] sm:$0xff]
    %v905 = vld [vmem:[%s5 + $0x10] sm:$0xff]
    %v906 = vld [vmem:[%s5 + $0x18] sm:$0xff]
    %v907 = vld [vmem:[%s5 + $0x20] sm:$0xff]
    %v908 = vld [vmem:[%s5 + $0x28] sm:$0xff]
    %v909 = vld [vmem:[%s5 + $0x30] sm:$0xff]
    %v910 = vld [vmem:[%s5 + $0x38] sm:$0xff]
    %v911 = vld [vmem:[%s5 + $0x40] sm:$0xff]
    %v912 = vld [vmem:[%s5 + $0x48] sm:$0xff]
    %v913 = vld [vmem:[%s5 + $0x50] sm:$0xff]
    %v914 = vld [vmem:[%s5 + $0x58] sm:$0xff]
    %v915 = vld [vmem:[%s5 + $0x60] sm:$0xff]
    %v916 = vld [vmem:[%s5 + $0x68] sm:$0xff]
    %v917 = vld [vmem:[%s5 + $0x70] sm:$0xff]
    %v918 = vld [vmem:[%s5 + $0x78] sm:$0xff]
    %920 = vset.pattern.permute.xlu0 0
    %921 = vperm.xlu0 %920, %v903
    %v922 = vpop.permute.xlu0 %921
    %925 = vset.pattern.permute.xlu0 0
    %926 = vperm.xlu0 %925, %v904
    %v927 = vpop.permute.xlu0 %926
    %930 = vset.pattern.permute.xlu0 0
    %931 = vperm.xlu0 %930, %v905
    %v932 = vpop.permute.xlu0 %931
    %935 = vset.pattern.permute.xlu0 0
    %936 = vperm.xlu0 %935, %v906
    %v937 = vpop.permute.xlu0 %936
    %940 = vset.pattern.permute.xlu0 0
    %941 = vperm.xlu0 %940, %v907
    %v942 = vpop.permute.xlu0 %941
    %945 = vset.pattern.permute.xlu0 0
    %946 = vperm.xlu0 %945, %v908
    %v947 = vpop.permute.xlu0 %946
    %950 = vset.pattern.permute.xlu0 0
    %951 = vperm.xlu0 %950, %v909
    %v952 = vpop.permute.xlu0 %951
    %955 = vset.pattern.permute.xlu0 0
    %956 = vperm.xlu0 %955, %v910
    %v957 = vpop.permute.xlu0 %956
    %960 = vset.pattern.permute.xlu0 0
    %961 = vperm.xlu0 %960, %v911
    %v962 = vpop.permute.xlu0 %961
    %965 = vset.pattern.permute.xlu0 0
    %966 = vperm.xlu0 %965, %v912
    %v967 = vpop.permute.xlu0 %966
    %970 = vset.pattern.permute.xlu0 0
    %971 = vperm.xlu0 %970, %v913
    %v972 = vpop.permute.xlu0 %971
    %975 = vset.pattern.permute.xlu0 0
    %976 = vperm.xlu0 %975, %v914
    %v977 = vpop.permute.xlu0 %976
    %980 = vset.pattern.permute.xlu0 0
    %981 = vperm.xlu0 %980, %v915
    %v982 = vpop.permute.xlu0 %981
    %985 = vset.pattern.permute.xlu0 0
    %986 = vperm.xlu0 %985, %v916
    %v987 = vpop.permute.xlu0 %986
    %990 = vset.pattern.permute.xlu0 0
    %991 = vperm.xlu0 %990, %v917
    %v992 = vpop.permute.xlu0 %991
    %995 = vset.pattern.permute.xlu0 0
    %996 = vperm.xlu0 %995, %v918
    %v997 = vpop.permute.xlu0 %996
    %v999 = vmul.f32 %v887, %v922
    %v1000 = vmul.f32 %v888, %v927
    %v1001 = vmul.f32 %v889, %v932
    %v1002 = vmul.f32 %v890, %v937
    %v1003 = vmul.f32 %v891, %v942
    %v1004 = vmul.f32 %v892, %v947
    %v1005 = vmul.f32 %v893, %v952
    %v1006 = vmul.f32 %v894, %v957
    %v1007 = vmul.f32 %v895, %v962
    %v1008 = vmul.f32 %v896, %v967
    %v1009 = vmul.f32 %v897, %v972
    %v1010 = vmul.f32 %v898, %v977
    %v1011 = vmul.f32 %v899, %v982
    %v1012 = vmul.f32 %v900, %v987
    %v1013 = vmul.f32 %v901, %v992
    %v1014 = vmul.f32 %v902, %v997
    %vm1015 = vcmask 64512
    %v1016 = vsel %vm1015, %v999, 0.0
    %v1017 = vsel %vm1015, %v1000, 0.0
    %v1018 = vadd.f32 %v1016, %v1017
    %v1019 = vsel %vm1015, %v1001, 0.0
    %v1020 = vadd.f32 %v1018, %v1019
    %v1021 = vsel %vm1015, %v1002, 0.0
    %v1022 = vadd.f32 %v1020, %v1021
    %v1023 = vsel %vm1015, %v1003, 0.0
    %v1024 = vadd.f32 %v1022, %v1023
    %v1025 = vsel %vm1015, %v1004, 0.0
    %v1026 = vadd.f32 %v1024, %v1025
    %v1027 = vsel %vm1015, %v1005, 0.0
    %v1028 = vadd.f32 %v1026, %v1027
    %v1029 = vsel %vm1015, %v1006, 0.0
    %v1030 = vadd.f32 %v1028, %v1029
    %v1031 = vsel %vm1015, %v1007, 0.0
    %v1032 = vadd.f32 %v1030, %v1031
    %v1033 = vsel %vm1015, %v1008, 0.0
    %v1034 = vadd.f32 %v1032, %v1033
    %v1035 = vsel %vm1015, %v1009, 0.0
    %v1036 = vadd.f32 %v1034, %v1035
    %v1037 = vsel %vm1015, %v1010, 0.0
    %v1038 = vadd.f32 %v1036, %v1037
    %v1039 = vsel %vm1015, %v1011, 0.0
    %v1040 = vadd.f32 %v1038, %v1039
    %v1041 = vsel %vm1015, %v1012, 0.0
    %v1042 = vadd.f32 %v1040, %v1041
    %v1043 = vsel %vm1015, %v1013, 0.0
    %v1044 = vadd.f32 %v1042, %v1043
    %v1045 = vsel %vm1015, %v1014, 0.0
    %v1046 = vadd.f32 %v1044, %v1045
    %v1047 = vrot.slane %v1046, 4
    %v1048 = vadd.f32 %v1046, %v1047
    %v1049 = vrot.slane %v1048, 2
    %v1050 = vadd.f32 %v1048, %v1049
    %v1051 = vrot.slane %v1050, 1
    %v1052 = vadd.f32 %v1050, %v1051
    %v1053 = vld [vmem:[#allocation2] sm:$0x1]
    %1055 = vset.pattern.permute.xlu0 0
    %1056 = vperm.xlu0 %1055, %v1053
    %v1057 = vpop.permute.xlu0 %1056
    %v1059 = vlaneseq
    %v1060 = vshrl.u32 %v1059, 7
    %v1061 = vsub.s32 0, %v1060
    %v1062 = vrot.slane %v1057, %v1061
    %v1063 = vadd.f32 %v1052, %v1062
    %vm1064 = vcmask 57344
    %1065 = vst.msk [vmem:[#allocation3] sm:$0x1] %vm1064, %v1063
    // Predicated region
    $region30: #{tpu_custom_call.1} parent=1 // pred_check
      _
    $region31: #{tpu_custom_call.1} parent=1 // pred_check_branch
      %1067 = sbr.rel (0) target = $region33
    $region32: #{tpu_custom_call.1} parent=1 // pred_region
      %s1069 = ssub.s32 16, 16
      %1070 = vsyncadd [#allocation4], %s1069
      %s1072 = sshll.u32 [#allocation3], 4
      %s1073 = int_to_ptr.vmem [resolvable:$true] %s1072
      %1075 = dma.vmem_to_hbm [thread:$0]  %s1073, 16, %s7, [#allocation4]
    $region33: #{tpu_custom_call.1} parent=1 // pred_fallthru
      _
    // Predicated region
    $region34: #{tpu_custom_call.1} parent=1 // pred_check
      _
    $region35: #{tpu_custom_call.1} parent=1 // pred_check_branch
      %1077 = sbr.rel (0) target = $region37
    $region36: #{tpu_custom_call.1} parent=1 // pred_region
      %1078 = dma.done [#allocation4], 16
    $region37: #{tpu_custom_call.1} parent=1 // pred_fallthru
      _
    %1079 = vsyncpa [#allocation4], 1

</llo_original>
